<compile_context>
chip_gen: v7x
topology: tpu7x:2x2x1
jax: 0.10.0
libtpu: 0.0.40
codegen_flags: <defaults>
</compile_context>

<pallas_src>
import functools
import math

import jax
import jax.numpy as jnp
from jax import lax
from jax.experimental import pallas as pl
from jax.experimental.pallas import tpu as pltpu


# ----------------------------- kernels ----------------------------------------
def _stats_kernel(x_ref, shift_ref, sum_ref, sq_ref, *acc,
                  true_l, tile_l, ragged_l):
    """Per-row shifted sums.  Grid = (row_tiles, l_tiles); j is the reduction."""
    j = pl.program_id(1)

    xs = x_ref[...].astype(jnp.float32) - shift_ref[...]      # (tile_r, tile_l)
    if ragged_l:
        # Last L-tile overhangs the array: mask the garbage lanes to 0 so they
        # contribute nothing to the shifted moments (true count = true_l).
        col = j * tile_l + lax.broadcasted_iota(jnp.int32, xs.shape, 1)
        xs = jnp.where(col < true_l, xs, 0.0)

    if not acc:
        # Single L-tile: reduce directly, no accumulation scratch needed.
        sum_ref[...] = jnp.sum(xs, axis=-1, keepdims=True)
        sq_ref[...] = jnp.sum(xs * xs, axis=-1, keepdims=True)
    else:
        acc_s, acc_q = acc

        @pl.when(j == 0)
        def _():
            acc_s[...] = jnp.zeros_like(acc_s)
            acc_q[...] = jnp.zeros_like(acc_q)

        # Lane-wise accumulation (pure VPU adds); the cross-lane XLU reduce is
        # deferred to the last j step.
        acc_s[...] += xs
        acc_q[...] += xs * xs

        @pl.when(j == pl.num_programs(1) - 1)
        def _():
            sum_ref[...] = jnp.sum(acc_s[...], axis=-1, keepdims=True)
            sq_ref[...] = jnp.sum(acc_q[...], axis=-1, keepdims=True)


def _apply_kernel(x_ref, scale_ref, off_ref, o_ref):
    """y = x * scale + offset  (per-row scale/offset, one FMA per element)."""
    x = x_ref[...].astype(jnp.float32)
    o_ref[...] = (x * scale_ref[...] + off_ref[...]).astype(o_ref.dtype)


# ----------------------------- helpers ----------------------------------------
def _round_up(n, m):
    return ((n + m - 1) // m) * m


def _vmem_capacity_bytes():
    try:
        cap = getattr(pltpu.get_tpu_info(), "vmem_capacity_bytes", None)
        if cap:
            return int(cap)
    except Exception:
        pass
    return 64 * 1024 * 1024          # conservative default (v7x-sized)


def _pick_tiles(R, L, itemsize, budget_bytes):
    """Block = (tile_r, tile_l) on the (R=N*C, L=H*W) view.

    tile_l is either the full L (exempt from the 128-multiple rule) or a
    multiple of 128; tile_r is a multiple of 8.  Grids use pl.cdiv, so neither
    needs to divide the array (edge tiles are partial)."""
    if 8 * L * itemsize <= budget_bytes:
        tile_l = L
    else:
        tile_l = max(128, (budget_bytes // (8 * itemsize) // 128) * 128)
    max_rows = max(8, budget_bytes // (tile_l * itemsize) // 8 * 8)
    tile_r = int(min(max_rows, _round_up(R, 8)))
    return tile_r, int(tile_l)


# ----------------------------- wrapper -----------------------------------------
def bayes_batch_norm_2d(x_nchw, params, *, eps=1e-5, donate_x=False):
    """x_nchw: [N, C, H, W].  params: dict of per-channel (C,) vectors."""
    N, C, H, W = x_nchw.shape
    L = H * W
    R = N * C
    x2 = x_nchw.reshape(R, L)                 # free view of contiguous NCHW

    # Bayesian sampling of the affine params: tiny O(C) op, outside the kernels.
    weight = (params["weight_mu"]
              + jnp.exp(params["weight_log_sigma"]) * params["weight_eps"]
              ).astype(jnp.float32)
    bias = (params["bias_mu"]
            + jnp.exp(params["bias_log_sigma"]) * params["bias_eps"]
            ).astype(jnp.float32)

    itemsize = jnp.dtype(x2.dtype).itemsize
    vmem_cap = _vmem_capacity_bytes()
    # 4 MiB blocks on 64-MiB-VMEM parts (v7x), 8 MiB on 128-MiB parts (v5e/v6e).
    budget = 4 * 1024 * 1024 if vmem_cap <= 64 * 1024 * 1024 else 8 * 1024 * 1024
    tile_r, tile_l = _pick_tiles(R, L, itemsize, budget)
    gi, gj = pl.cdiv(R, tile_r), pl.cdiv(L, tile_l)
    ragged_l = (L % tile_l) != 0
    block_bytes = tile_r * tile_l * itemsize
    # Leave headroom below physical VMEM (never request all of v7x's 64 MiB);
    # still lifts v5e's 16 MiB scoped default.
    vmem_limit = int(min(0.75 * vmem_cap, max(32 * 1024 * 1024, 8 * block_bytes)))

    # Per-row shift (the row's first element) for numerically stable shifted
    # accumulation of the second moment; tiny strided read.
    shift_rows = x2[:, :1].astype(jnp.float32)                     # (R, 1)

    row_spec = pl.BlockSpec((tile_r, 1), lambda i, j: (i, 0))
    x_spec = pl.BlockSpec((tile_r, tile_l), lambda i, j: (i, j))

    # ---- pass 1: per-row shifted sums / sums-of-squares -----------------------
    stats_kernel = functools.partial(_stats_kernel, true_l=L, tile_l=tile_l,
                                     ragged_l=ragged_l)
    scratch = ([] if gj == 1
               else [pltpu.VMEM((tile_r, tile_l), jnp.float32)] * 2)
    ssum, ssq = pl.pallas_call(
        stats_kernel,
        out_shape=(jax.ShapeDtypeStruct((R, 1), jnp.float32),
                   jax.ShapeDtypeStruct((R, 1), jnp.float32)),
        grid_spec=pltpu.PrefetchScalarGridSpec(
            num_scalar_prefetch=0,
            grid=(gi, gj),
            in_specs=[x_spec, row_spec],
            out_specs=[row_spec, row_spec],
            scratch_shapes=scratch),
        compiler_params=pltpu.CompilerParams(
            dimension_semantics=("parallel", "arbitrary"),
            vmem_limit_bytes=vmem_limit),
    )(x2, shift_rows)

    # ---- tiny O(N*C) epilogue: combine rows, fold stats + affine --------------
    n = float(L)
    count = float(N * L)
    s_nc = shift_rows.reshape(N, C)
    sum_nc = ssum.reshape(N, C)
    sq_nc = ssq.reshape(N, C)
    mean = jnp.sum(sum_nc + n * s_nc, axis=0) / count              # (C,)
    d = s_nc - mean[None, :]
    var = jnp.sum(sq_nc + 2.0 * d * sum_nc + n * d * d, axis=0) / count
    var = jnp.maximum(var, 0.0)                                    # biased var
    scale_c = weight * lax.rsqrt(var + float(eps))
    off_c = bias - mean * scale_c
    scale_rows = jnp.broadcast_to(scale_c[None, :], (N, C)).reshape(R, 1)
    off_rows = jnp.broadcast_to(off_c[None, :], (N, C)).reshape(R, 1)

    # ---- pass 2: y = x * scale + offset  (fully parallel grid) ----------------
    y2 = pl.pallas_call(
        _apply_kernel,
        out_shape=jax.ShapeDtypeStruct((R, L), x2.dtype),
        grid_spec=pltpu.PrefetchScalarGridSpec(
            num_scalar_prefetch=0,
            grid=(gi, gj),
            in_specs=[x_spec, row_spec, row_spec],
            out_specs=x_spec,
            scratch_shapes=[]),
        compiler_params=pltpu.CompilerParams(
            dimension_semantics=("parallel", "parallel"),
            vmem_limit_bytes=vmem_limit),
        input_output_aliases=({0: 0} if donate_x else {}),
    )(x2, scale_rows, off_rows)

    return y2.reshape(N, C, H, W)


# ----------------------------- reference (plain JAX) ---------------------------
def _reference(x_nchw, params, eps):
    w = params["weight_mu"] + jnp.exp(params["weight_log_sigma"]) * params["weight_eps"]
    b = params["bias_mu"] + jnp.exp(params["bias_log_sigma"]) * params["bias_eps"]
    mean = jnp.mean(x_nchw, axis=(0, 2, 3))
    var = jnp.var(x_nchw, axis=(0, 2, 3))                # biased
    xhat = (x_nchw - mean[None, :, None, None]) / jnp.sqrt(
        var[None, :, None, None] + eps)
    return xhat * w[None, :, None, None] + b[None, :, None, None]


if __name__ == "__main__":
    key = jax.random.PRNGKey(0)
    k_x, k_wmu, k_weps, k_beps = jax.random.split(key, 4)

    N, C, H, W = 2, 4, 16, 16
    prior_sigma, eps = 0.1, 1e-5
    log_sigma = math.log(prior_sigma)

    x = jax.random.normal(k_x, (N, C, H, W), dtype=jnp.float32)

    # Deterministic init mirroring reset_parameters() + a fixed Gaussian draw
    # for the reparameterization noise (module "frozen").
    params = {
        "weight_mu": jax.random.uniform(k_wmu, (C,), dtype=jnp.float32),  # uniform_()
        "weight_log_sigma": jnp.full((C,), log_sigma, dtype=jnp.float32),
        "weight_eps": jax.random.normal(k_weps, (C,), dtype=jnp.float32),
        "bias_mu": jnp.zeros((C,), dtype=jnp.float32),                    # zero_()
        "bias_log_sigma": jnp.full((C,), log_sigma, dtype=jnp.float32),
        "bias_eps": jax.random.normal(k_beps, (C,), dtype=jnp.float32),
    }

    y_ref = _reference(x, params, eps)

    y = bayes_batch_norm_2d(x, params, eps=eps)
    y = jax.block_until_ready(y)
    assert y.shape == (N, C, H, W)
    assert jnp.allclose(y, y_ref, atol=1e-4, rtol=1e-4)

    # Donated-input path (apply call aliases x -> y; XLA copies if x is live).
    y2 = jax.block_until_ready(bayes_batch_norm_2d(x, params, eps=eps, donate_x=True))
    assert jnp.allclose(y2, y_ref, atol=1e-4, rtol=1e-4)

    print("KERNEL_OK")
</pallas_src>

<mosaic_0001>
module attributes {stable_mosaic.version = 11 : i64} {
  func.func @_stats_kernel(%arg0: i32, %arg1: i32, %arg2: memref<8x256xf32, #tpu.memory_space<vmem>>, %arg3: memref<8x1xf32, #tpu.memory_space<vmem>>, %arg4: memref<8x1xf32, #tpu.memory_space<vmem>>, %arg5: memref<8x1xf32, #tpu.memory_space<vmem>>) attributes {dimension_semantics = [#tpu.dimension_semantics<parallel>, #tpu.dimension_semantics<arbitrary>], iteration_bounds = array<i64: 1, 1>, scalar_prefetch = 0 : i64, scratch_operands = 0 : i64, tpu.core_type = #tpu.core_type<tc>, window_params = [{transform_indices = @transform_0, window_bounds = array<i64: 8, 256>}, {transform_indices = @transform_1, window_bounds = array<i64: 8, 1>}, {transform_indices = @transform_2, window_bounds = array<i64: 8, 1>}, {transform_indices = @transform_3, window_bounds = array<i64: 8, 1>}]} {
    %c0 = arith.constant 0 : index
    %c0_0 = arith.constant 0 : index
    %0 = vector.load %arg2[%c0, %c0_0] : memref<8x256xf32, #tpu.memory_space<vmem>>, vector<8x256xf32>
    %c0_1 = arith.constant 0 : index
    %c0_2 = arith.constant 0 : index
    %1 = vector.load %arg3[%c0_1, %c0_2] : memref<8x1xf32, #tpu.memory_space<vmem>>, vector<8x1xf32>
    %2 = vector.broadcast %1 : vector<8x1xf32> to vector<8x256xf32>
    %3 = arith.subf %0, %2 : vector<8x256xf32>
    %cst = arith.constant dense<0.000000e+00> : vector<8xf32>
    %4 = vector.multi_reduction <add>, %3, %cst [1] : vector<8x256xf32> to vector<8xf32>
    %5 = vector.shape_cast %4 : vector<8xf32> to vector<8x1xf32>
    %c0_3 = arith.constant 0 : index
    %c0_4 = arith.constant 0 : index
    %6 = vector.load %arg4[%c0_3, %c0_4] : memref<8x1xf32, #tpu.memory_space<vmem>>, vector<8x1xf32>
    tpu.vector_store %arg4[%c0_3, %c0_4], %5 {strides = array<i32>} : memref<8x1xf32, #tpu.memory_space<vmem>>, vector<8x1xf32>,
    %7 = arith.mulf %3, %3 : vector<8x256xf32>
    %cst_5 = arith.constant dense<0.000000e+00> : vector<8xf32>
    %8 = vector.multi_reduction <add>, %7, %cst_5 [1] : vector<8x256xf32> to vector<8xf32>
    %9 = vector.shape_cast %8 : vector<8xf32> to vector<8x1xf32>
    %c0_6 = arith.constant 0 : index
    %c0_7 = arith.constant 0 : index
    %10 = vector.load %arg5[%c0_6, %c0_7] : memref<8x1xf32, #tpu.memory_space<vmem>>, vector<8x1xf32>
    tpu.vector_store %arg5[%c0_6, %c0_7], %9 {strides = array<i32>} : memref<8x1xf32, #tpu.memory_space<vmem>>, vector<8x1xf32>,
    return
  }
  func.func @transform_0(%arg0: i32, %arg1: i32) -> (i32, i32) {
    %c0_i32 = arith.constant 0 : i32
    return %arg0, %arg1 : i32, i32
  }
  func.func @transform_1(%arg0: i32, %arg1: i32) -> (i32, i32) {
    %c0_i32 = arith.constant 0 : i32
    %c0_i32_0 = arith.constant 0 : i32
    return %arg0, %c0_i32 : i32, i32
  }
  func.func @transform_2(%arg0: i32, %arg1: i32) -> (i32, i32) {
    %c0_i32 = arith.constant 0 : i32
    %c0_i32_0 = arith.constant 0 : i32
    return %arg0, %c0_i32 : i32, i32
  }
  func.func @transform_3(%arg0: i32, %arg1: i32) -> (i32, i32) {
    %c0_i32 = arith.constant 0 : i32
    %c0_i32_0 = arith.constant 0 : i32
    return %arg0, %c0_i32 : i32, i32
  }
}

</mosaic_0001>

<llo_original>
// kernel: tpu_custom_call.1
$region0: #{tpu_custom_call.1}
  #allocation0 [shape = 'u32[]', space=smem, size = 0x4, offset = 0x4, fixed_abs, tag = 'smem constant byte address 0x4 - core index']
  #allocation1 [shape = 'u32[144,128]{1,0:T(1,128)}', space=vmem, size = 0x12000, scoped, tag = 'internal scratch']
  %s0 = inlined_call_operand.hbm [shape: f32[8,256], index: 0, kind: input, shape index: {}]
  %s1 = inlined_call_operand.vmem [shape: f32[8,1], index: 1, kind: input, shape index: {}]
  %s2 = inlined_call_operand.vmem [shape: f32[8,1], index: 2, kind: output, shape index: {0}]
  %s3 = inlined_call_operand.vmem [shape: f32[8,1], index: 3, kind: output, shape index: {1}]
  %4 = xla_tuple %s2, %s3
  %s5 = sld [smem:[#allocation0]]
  $region30: #{tpu_custom_call.1} parent=0
    _
  %s7 = ssub.s32 1, %s5
  %s8 = scalar_select 0, %s7, %s5
  $region1: #{tpu_custom_call.1} parent=0
    #allocation2 [shape = 'u8[8192]{0}', space=vmem, size = 0x2000, scoped, tag = 'input window, operand 0, single buffered']
    #allocation3 [shape = 's32[1]{0}', space=sflag, size = 0x4, scoped, tag = 'scoped memory for tpu_custom_call.1']
    %9 = vsyncpa [#allocation3], 0
    // Predicated region
    $region2: #{tpu_custom_call.1} parent=1 // pred_check
      _
    $region3: #{tpu_custom_call.1} parent=1 // pred_check_branch
      %11 = sbr.rel (0) target = $region5
    $region4: #{tpu_custom_call.1} parent=1 // pred_region
      %s13 = ssub.s32 256, 256
      %14 = vsyncadd [#allocation3], %s13
      %s16 = sshll.u32 [#allocation2], 4
      %s17 = int_to_ptr.vmem [resolvable:$true] %s16
      %19 = dma.hbm_to_vmem [thread:$0]  %s0, 256, %s17, [#allocation3]
    $region5: #{tpu_custom_call.1} parent=1 // pred_fallthru
      _
    // Predicated region
    $region6: #{tpu_custom_call.1} parent=1 // pred_check
      _
    $region7: #{tpu_custom_call.1} parent=1 // pred_check_branch
      %21 = sbr.rel (0) target = $region9
    $region8: #{tpu_custom_call.1} parent=1 // pred_region
      _
    $region9: #{tpu_custom_call.1} parent=1 // pred_fallthru
      _
    // Predicated region
    $region10: #{tpu_custom_call.1} parent=1 // pred_check
      _
    $region11: #{tpu_custom_call.1} parent=1 // pred_check_branch
      %23 = sbr.rel (0) target = $region13
    $region12: #{tpu_custom_call.1} parent=1 // pred_region
      %24 = dma.done [#allocation3], 256
    $region13: #{tpu_custom_call.1} parent=1 // pred_fallthru
      _
    %v25 = vld [vmem:[#allocation2] sm:$0xff]
    %v26 = vld [vmem:[#allocation2 + $0x8] sm:$0xff]
    %v27 = vld [vmem:[%s1] sm:$0xff]
    %29 = vset.pattern.permute.xlu0 0
    %30 = vperm.xlu0 %29, %v27
    %v31 = vpop.permute.xlu0 %30
    %v33 = vsub.f32 %v25, %v31
    %v34 = vsub.f32 %v26, %v31
    %v35 = vadd.f32 %v33, %v34
    %36 = vadd.xlane.f32.xlu0 %v35
    %v37 = vpop.xlane.xlu0 %36
    %vm38 = vcmask 7168
    %39 = vst.msk [vmem:[%s2] sm:$0xff] %vm38, %v37
    %v40 = vmul.f32 %v33, %v33
    %v41 = vmul.f32 %v34, %v34
    %v42 = vadd.f32 %v40, %v41
    %43 = vadd.xlane.f32.xlu0 %v42
    %v44 = vpop.xlane.xlu0 %43
    %45 = vst.msk [vmem:[%s3] sm:$0xff] %vm38, %v44
    // Predicated region
    $region14: #{tpu_custom_call.1} parent=1 // pred_check
      _
    $region15: #{tpu_custom_call.1} parent=1 // pred_check_branch
      %47 = sbr.rel (0) target = $region17
    $region16: #{tpu_custom_call.1} parent=1 // pred_region
      _
    $region17: #{tpu_custom_call.1} parent=1 // pred_fallthru
      _
    // Predicated region
    $region18: #{tpu_custom_call.1} parent=1 // pred_check
      _
    $region19: #{tpu_custom_call.1} parent=1 // pred_check_branch
      %49 = sbr.rel (0) target = $region21
    $region20: #{tpu_custom_call.1} parent=1 // pred_region
      _
    $region21: #{tpu_custom_call.1} parent=1 // pred_fallthru
      _
    // Predicated region
    $region22: #{tpu_custom_call.1} parent=1 // pred_check
      _
    $region23: #{tpu_custom_call.1} parent=1 // pred_check_branch
      %51 = sbr.rel (0) target = $region25
    $region24: #{tpu_custom_call.1} parent=1 // pred_region
      _
    $region25: #{tpu_custom_call.1} parent=1 // pred_fallthru
      _
    // Predicated region
    $region26: #{tpu_custom_call.1} parent=1 // pred_check
      _
    $region27: #{tpu_custom_call.1} parent=1 // pred_check_branch
      %53 = sbr.rel (0) target = $region29
    $region28: #{tpu_custom_call.1} parent=1 // pred_region
      _
    $region29: #{tpu_custom_call.1} parent=1 // pred_fallthru
      _
    %54 = vsyncpa [#allocation3], 1

</llo_original>
